<compile_context>
chip_gen: v7x
topology: tpu7x:2x2x1
jax: 0.10.0
libtpu: 0.0.40
codegen_flags: <defaults>
</compile_context>

<pallas_src>
import functools

import jax
import jax.numpy as jnp
from jax.experimental import pallas as pl
from jax.experimental.pallas import tpu as pltpu


def _round_up(x, m):
    return ((x + m - 1) // m) * m


# --------------------------------------------------------------------------------------
# Kernel A: fused projection for all heads + folded attention columns, single lane-dense
# output slab.
#   x_ref : [tp, F]        bf16 node features (one tile of input nodes)
#   w_ref : [F, WP]        bf16 [W^T | W_h^T a_src_h | W_h^T a_dst_h | zero pad] (WP % 128 == 0)
#   o_ref : [tp, WP]       f32  projected slab (xw | e_src | e_dst | pad)
# --------------------------------------------------------------------------------------
def _gat_proj_kernel(x_ref, w_ref, o_ref):
    o_ref[...] = jnp.dot(x_ref[...], w_ref[...], preferred_element_type=jnp.float32)


# --------------------------------------------------------------------------------------
# Kernel B: online-softmax attention + aggregation.
#   grid = (N_out tiles [parallel], N_in tiles [arbitrary, reduction last])
#   e_dst_ref : [tm, H]     f32   destination logit term per head
#   e_src_ref : [H, tk]     f32   source logit term per head (row form, no transpose needed)
#   mask_ref  : [tm, tk]    int8  1 where an edge exists (self loops included), else 0
#   xw_ref    : [tk, H*C]   bf16  projected source features (heads concatenated)
#   o_ref     : [tm, H*C]   f32   output tile (heads concatenated, lane-dense)
#   m_sc/l_sc : [tm, H] f32, acc_sc : [tm, H*C] f32   online-softmax state (VMEM scratch)
# --------------------------------------------------------------------------------------
def _gat_attn_kernel(e_dst_ref, e_src_ref, mask_ref, xw_ref, o_ref,
                     m_sc, l_sc, acc_sc, *, num_heads, head_channels, negative_slope):
    H, C = num_heads, head_channels
    j = pl.program_id(1)

    @pl.when(j == 0)
    def _():
        m_sc[...] = jnp.full_like(m_sc, -1e30)
        l_sc[...] = jnp.zeros_like(l_sc)
        acc_sc[...] = jnp.zeros_like(acc_sc)

    # Additive mask bias built once per tile (hoisted out of the head loop):
    # 0 where an edge exists, -1e9 otherwise.  Masked entries underflow to p == 0;
    # the self loop guarantees every real destination row has at least one edge.
    bias = (mask_ref[...].astype(jnp.float32) - 1.0) * 1e9            # [tm, tk]
    xw = xw_ref[...]                                                  # [tk, H*C] bf16
    # Shared ones column: the softmax row-sum rides along the aggregation matmul on the
    # (otherwise mostly idle) MXU instead of a per-head cross-lane reduction.
    ones_col = jnp.ones((xw.shape[0], 1), xw.dtype)                   # [tk, 1]

    for h in range(H):   # static unroll; per-head state goes straight to VMEM scratch
        logits = e_dst_ref[:, h:h + 1] + e_src_ref[h:h + 1, :]        # [tm, tk]
        # LeakyReLU (valid for 0 <= negative_slope <= 1): max(x, slope*x)
        logits = jnp.maximum(logits, negative_slope * logits)
        masked = logits + bias

        m_prev = m_sc[:, h:h + 1]                                     # [tm, 1]
        m_new = jnp.maximum(m_prev, jnp.max(masked, axis=-1, keepdims=True))
        corr = jnp.exp(m_prev - m_new)                                # [tm, 1]
        p = jnp.exp(masked - m_new).astype(xw.dtype)                  # [tm, tk] bf16

        # Aggregation + row-sum in one MXU pass: [tm,tk] @ [tk, C+1] -> [tm, C] | [tm, 1]
        rhs = jnp.concatenate([xw[:, h * C:(h + 1) * C], ones_col], axis=-1)
        res = jnp.dot(p, rhs, preferred_element_type=jnp.float32)

        # Write per-head state immediately (bounded live ranges across the unrolled loop).
        m_sc[:, h:h + 1] = m_new
        l_sc[:, h:h + 1] = corr * l_sc[:, h:h + 1] + res[:, C:]
        acc_sc[:, h * C:(h + 1) * C] = corr * acc_sc[:, h * C:(h + 1) * C] + res[:, :C]

    @pl.when(j == pl.num_programs(1) - 1)
    def _():
        # Deferred normalization; state is read back from VMEM scratch (not loop temporaries).
        outs = []
        for h in range(H):
            inv = pl.reciprocal(l_sc[:, h:h + 1], approx=True)        # EUP
            outs.append(acc_sc[:, h * C:(h + 1) * C] * inv)
        o_ref[...] = jnp.concatenate(outs, axis=-1).astype(o_ref.dtype)


# --------------------------------------------------------------------------------------
# Wrapper
# --------------------------------------------------------------------------------------
def gat_conv_forward(x_feat, lin_weight, attn_weights, csr_row_ptr, csr_col_ind, *,
                     num_heads, head_channels, negative_slope=0.2,
                     add_self_loops=True, mean_output=False,
                     nout_tile=None, nin_tile=None, mask_buffers=None):
    """x_feat: [N_in, F] f32; lin_weight: [H*C, F]; attn_weights: [1, 2*H*C];
    csr_row_ptr: [N_out+1] int32; csr_col_ind: [nnz] int32 (values < N_in).
    Destination node i corresponds to input node i (MFG convention) for self loops."""
    n_in, in_channels = x_feat.shape
    n_out = int(csr_row_ptr.shape[0]) - 1
    H, C = num_heads, head_channels
    HC = H * C

    # ---- tile sizes ----------------------------------------------------------------
    # Big tiles amortize the ~0.35 us per-grid-step overhead and cut xw re-streaming.
    # nin_tile: lane dim of the mask tile -> multiple of 128.
    # nout_tile: multiple of 32 (int8 mask sublane tiling); kept small enough that the
    # parallel i-axis has >= 2 tiles (megacore sharding on v7x's two TensorCores).
    if nin_tile is None:
        nin_tile = min(2048, _round_up(n_in, 128))
    if nout_tile is None:
        nout_tile = 256
        while nout_tile > 32 and pl.cdiv(n_out, nout_tile) < 2:
            nout_tile //= 2
    n_in_pad = _round_up(n_in, nin_tile)
    n_out_pad = _round_up(n_out, nout_tile)

    # ---- parameter prep (glue, tiny) -------------------------------------------------
    w_t = jnp.transpose(lin_weight)                               # [F, H*C]
    a_src = attn_weights[0, :HC].reshape(H, C)
    a_dst = attn_weights[0, HC:].reshape(H, C)
    w_heads = w_t.reshape(in_channels, H, C)
    w_esrc = jnp.einsum("fhc,hc->fh", w_heads, a_src)             # [F, H]
    w_edst = jnp.einsum("fhc,hc->fh", w_heads, a_dst)             # [F, H]
    wp = _round_up(HC + 2 * H, 128)                               # lane-dense slab width
    w_aug = jnp.zeros((in_channels, wp), jnp.float32)
    w_aug = w_aug.at[:, :HC].set(w_t)
    w_aug = w_aug.at[:, HC:HC + H].set(w_esrc)
    w_aug = w_aug.at[:, HC + H:HC + 2 * H].set(w_edst)
    w_aug = w_aug.astype(jnp.bfloat16)

    x_pad = jnp.zeros((n_in_pad, in_channels), jnp.float32).at[:n_in].set(x_feat)
    x_pad = x_pad.astype(jnp.bfloat16)

    # ---- kernel A: projection (all heads + attention columns, one lane-dense slab) ----
    proj = pl.pallas_call(
        _gat_proj_kernel,
        out_shape=jax.ShapeDtypeStruct((n_in_pad, wp), jnp.float32),
        grid_spec=pltpu.PrefetchScalarGridSpec(
            num_scalar_prefetch=0,
            grid=(n_in_pad // nin_tile,),
            in_specs=[
                pl.BlockSpec((nin_tile, in_channels), lambda i: (i, 0)),
                pl.BlockSpec((in_channels, wp), lambda i: (0, 0)),
            ],
            out_specs=pl.BlockSpec((nin_tile, wp), lambda i: (i, 0)),
        ),
        compiler_params=pltpu.CompilerParams(dimension_semantics=("parallel",)),
    )(x_pad, w_aug)

    xw_pad = proj[:, :HC].astype(jnp.bfloat16)                    # [N_in_pad, H*C]
    e_srcT = jnp.transpose(proj[:, HC:HC + H])                    # [H, N_in_pad]
    e_dst = proj[:n_out, HC + H:HC + 2 * H]                       # [n_out, H]
    e_dst = jnp.pad(e_dst, ((0, n_out_pad - n_out), (0, 0)))      # [n_out_pad, H]

    # ---- int8 edge mask built ONCE at padded shape, straight from CSR ----------------
    nnz = csr_col_ind.shape[0]
    row_ids = jnp.searchsorted(csr_row_ptr.astype(jnp.int32),
                               jnp.arange(nnz, dtype=jnp.int32), side="right") - 1
    mask = jnp.zeros((n_out_pad, n_in_pad), jnp.int8)
    mask = mask.at[row_ids, csr_col_ind].set(1)
    if add_self_loops:
        diag = jnp.arange(n_out, dtype=jnp.int32)
        mask = mask.at[diag, diag].set(1)

    # ---- VMEM budgeting: raise the scoped limit only if the user picked huge tiles ----
    vmem_need = (2 * (nout_tile * nin_tile                  # int8 mask (double buffered)
                      + nin_tile * HC * 2                   # xw bf16
                      + H * nin_tile * 4                    # e_src
                      + nout_tile * H * 4                   # e_dst
                      + nout_tile * HC * 4)                 # output
                 + nout_tile * (2 * H + HC) * 4             # m/l/acc scratch
                 + 2 * nout_tile * nin_tile * 4)            # in-kernel f32 bias temp + slack
    cp_kwargs = dict(dimension_semantics=("parallel", "arbitrary"))
    if vmem_need > 24 * 1024 * 1024:
        # NOTE: v7x has 64 MiB physical VMEM (v5e/v6e 128 MiB) - cap conservatively.
        cp_kwargs["vmem_limit_bytes"] = min(int(vmem_need * 3 // 2), 60 * 1024 * 1024)

    mask_spec_kwargs = {}
    if mask_buffers is not None:
        # Optional (v5e): deeper pipeline on the dominant mask stream if its DMA is exposed.
        mask_spec_kwargs["pipeline_mode"] = pl.Buffered(mask_buffers)
    mask_spec = pl.BlockSpec((nout_tile, nin_tile), lambda i, j: (i, j), **mask_spec_kwargs)

    # ---- kernel B: online-softmax attention + aggregation ----------------------------
    kernel_b = functools.partial(_gat_attn_kernel, num_heads=H,
                                 head_channels=C, negative_slope=negative_slope)
    out = pl.pallas_call(
        kernel_b,
        out_shape=jax.ShapeDtypeStruct((n_out_pad, HC), jnp.float32),
        grid_spec=pltpu.PrefetchScalarGridSpec(
            num_scalar_prefetch=0,
            grid=(n_out_pad // nout_tile, n_in_pad // nin_tile),
            in_specs=[
                pl.BlockSpec((nout_tile, H), lambda i, j: (i, 0)),         # e_dst
                pl.BlockSpec((H, nin_tile), lambda i, j: (0, j)),          # e_src (row form)
                mask_spec,                                                  # int8 mask
                pl.BlockSpec((nin_tile, HC), lambda i, j: (j, 0)),         # xw
            ],
            out_specs=pl.BlockSpec((nout_tile, HC), lambda i, j: (i, 0)),
            scratch_shapes=[
                pltpu.VMEM((nout_tile, H), jnp.float32),                   # running max
                pltpu.VMEM((nout_tile, H), jnp.float32),                   # running denom
                pltpu.VMEM((nout_tile, HC), jnp.float32),                  # running accum
            ],
        ),
        compiler_params=pltpu.CompilerParams(**cp_kwargs),
    )(e_dst, e_srcT, mask, xw_pad)

    y = out[:n_out]                                               # [N_out, H*C], heads concat
    if mean_output:
        return y.reshape(n_out, H, C).mean(axis=1)                # [N_out, C]
    return y


# --------------------------------------------------------------------------------------
# Synthetic init + pure-JAX reference (f32) for a silent sanity check.
# --------------------------------------------------------------------------------------
def _init_params(key, in_channels, head_channels, num_heads):
    out_channels = head_channels * num_heads
    k1, k2, k3 = jax.random.split(key, 3)
    gain = 2.0 ** 0.5                                             # calculate_gain('relu')
    bound_lin = gain * (6.0 / (in_channels + out_channels)) ** 0.5
    lin_weight = jax.random.uniform(k1, (out_channels, in_channels),
                                    jnp.float32, -bound_lin, bound_lin)
    bound_attn = (6.0 / (out_channels + 1)) ** 0.5
    a_src = jax.random.uniform(k2, (1, out_channels), jnp.float32, -bound_attn, bound_attn)
    a_dst = jax.random.uniform(k3, (1, out_channels), jnp.float32, -bound_attn, bound_attn)
    attn_weights = jnp.concatenate([a_src, a_dst], axis=-1)       # [1, 2*H*C]
    return lin_weight, attn_weights


def _reference(x, lin_w, attn, adj, H, C, neg_slope, mean_output):
    n_out = adj.shape[0]
    out_channels = H * C
    xw = (x @ lin_w.T).reshape(-1, H, C)
    a_src = attn[0, :out_channels].reshape(H, C)
    a_dst = attn[0, out_channels:].reshape(H, C)
    e_src = jnp.einsum("nhc,hc->nh", xw, a_src)
    e_dst = jnp.einsum("nhc,hc->nh", xw[:n_out], a_dst)
    logits = e_dst[:, None, :] + e_src[None, :, :]                # [N_out, N_in, H]
    logits = jnp.where(logits >= 0, logits, neg_slope * logits)
    mask = adj[..., None] > 0.5
    masked = jnp.where(mask, logits, -1e30)
    p = jnp.exp(masked - masked.max(axis=1, keepdims=True))
    p = jnp.where(mask, p, 0.0)
    alpha = p / p.sum(axis=1, keepdims=True)
    out = jnp.einsum("mnh,nhc->mhc", alpha, xw)                   # [N_out, H, C]
    if mean_output:
        return out.mean(axis=1)
    return out.reshape(n_out, H * C)


if __name__ == "__main__":
    # Small deterministic problem (sized so the 2-D online-softmax grid has >1 tile per axis).
    in_channels = 64
    head_channels = 16
    num_heads = 4
    negative_slope = 0.2
    n_in = 256        # input (source) nodes
    n_out = 64        # output (destination) nodes
    deg = 8           # sampled neighbors per output node (before self loop)

    key = jax.random.PRNGKey(0)
    kx, kp = jax.random.split(key)
    x_feat = jax.random.normal(kx, (n_in, in_channels), jnp.float32)
    lin_weight, attn_weights = _init_params(kp, in_channels, head_channels, num_heads)

    # Deterministic CSR graph (mirrors csr_row_ptr / csr_col_ind module inputs); offsets
    # chosen so no sampled neighbor equals the node itself.
    csr_row_ptr = jnp.arange(0, n_out * deg + 1, deg, dtype=jnp.int32)
    csr_col_ind = jnp.array(
        [[(i + 3 * o) % n_in for o in range(1, deg + 1)] for i in range(n_out)],
        dtype=jnp.int32).reshape(-1)

    y = gat_conv_forward(x_feat, lin_weight, attn_weights, csr_row_ptr, csr_col_ind,
                         num_heads=num_heads, head_channels=head_channels,
                         negative_slope=negative_slope, add_self_loops=True,
                         mean_output=False,
                         nout_tile=32, nin_tile=128)              # force a 2x2 tile grid
    y = jax.block_until_ready(y)

    # Dense reference adjacency (self loops included) purely for the correctness check.
    row_ids = jnp.repeat(jnp.arange(n_out, dtype=jnp.int32), deg)
    adj = jnp.zeros((n_out, n_in), jnp.float32)
    adj = adj.at[row_ids, csr_col_ind].set(1.0)
    adj = adj.at[jnp.arange(n_out), jnp.arange(n_out)].set(1.0)

    y_ref = _reference(x_feat, lin_weight, attn_weights, adj,
                       num_heads, head_channels, negative_slope, False)
    assert y.shape == (n_out, num_heads * head_channels)
    # bf16 MXU inputs + approx reciprocal -> compare against the f32 reference loosely.
    max_err = float(jnp.max(jnp.abs(y - y_ref)))
    assert jnp.allclose(y, y_ref, rtol=5e-2, atol=5e-2), f"max abs err {max_err}"

    print("KERNEL_OK")
</pallas_src>

<mosaic_0001>
module attributes {stable_mosaic.version = 11 : i64} {
  func.func @_gat_proj_kernel(%arg0: i32, %arg1: memref<128x64xbf16, #tpu.memory_space<vmem>>, %arg2: memref<64x128xbf16, #tpu.memory_space<vmem>>, %arg3: memref<128x128xf32, #tpu.memory_space<vmem>>) attributes {dimension_semantics = [#tpu.dimension_semantics<parallel>], iteration_bounds = array<i64: 2>, scalar_prefetch = 0 : i64, scratch_operands = 0 : i64, tpu.core_type = #tpu.core_type<tc>, window_params = [{transform_indices = @transform_0, window_bounds = array<i64: 128, 64>}, {pipeline_mode = #tpu.pipeline_mode<synchronous>, transform_indices = @transform_1, window_bounds = array<i64: 64, 128>}, {transform_indices = @transform_2, window_bounds = array<i64: 128, 128>}]} {
    %c0 = arith.constant 0 : index
    %c0_0 = arith.constant 0 : index
    %0 = vector.load %arg1[%c0, %c0_0] : memref<128x64xbf16, #tpu.memory_space<vmem>>, vector<128x64xbf16>
    %c0_1 = arith.constant 0 : index
    %c0_2 = arith.constant 0 : index
    %1 = vector.load %arg2[%c0_1, %c0_2] : memref<64x128xbf16, #tpu.memory_space<vmem>>, vector<64x128xbf16>
    %cst = arith.constant dense<0.000000e+00> : vector<128x128xf32>
    %2 = tpu.matmul %0, %1, %cst {dimension_numbers = #tpu.dot_dimension_numbers<[1], [0], [0], [1], [0, 0, 1, 1], [], []>} : vector<128x64xbf16>, vector<64x128xbf16>, vector<128x128xf32> -> vector<128x128xf32>
    %c0_3 = arith.constant 0 : index
    %c0_4 = arith.constant 0 : index
    %3 = vector.load %arg3[%c0_3, %c0_4] : memref<128x128xf32, #tpu.memory_space<vmem>>, vector<128x128xf32>
    tpu.vector_store %arg3[%c0_3, %c0_4], %2 {strides = array<i32>} : memref<128x128xf32, #tpu.memory_space<vmem>>, vector<128x128xf32>,
    return
  }
  func.func @transform_0(%arg0: i32) -> (i32, i32) {
    %c0_i32 = arith.constant 0 : i32
    %c0_i32_0 = arith.constant 0 : i32
    return %arg0, %c0_i32 : i32, i32
  }
  func.func @transform_1(%arg0: i32) -> (i32, i32) {
    %c0_i32 = arith.constant 0 : i32
    %c0_i32_0 = arith.constant 0 : i32
    %c0_i32_1 = arith.constant 0 : i32
    return %c0_i32, %c0_i32_0 : i32, i32
  }
  func.func @transform_2(%arg0: i32) -> (i32, i32) {
    %c0_i32 = arith.constant 0 : i32
    %c0_i32_0 = arith.constant 0 : i32
    return %arg0, %c0_i32 : i32, i32
  }
}

</mosaic_0001>

<llo_original>
// kernel: tpu_custom_call.1
$region0: #{tpu_custom_call.1}
  #allocation0 [shape = 'u32[]', space=smem, size = 0x4, offset = 0x4, fixed_abs, tag = 'smem constant byte address 0x4 - core index']
  #allocation1 [shape = 'u32[144,128]{1,0:T(1,128)}', space=vmem, size = 0x12000, scoped, tag = 'internal scratch']
  %s0 = inlined_call_operand.vmem [shape: bf16[256,64], index: 0, kind: input, shape index: {}]
  %s1 = inlined_call_operand.vmem [shape: bf16[64,128], index: 1, kind: input, shape index: {}]
  %s2 = inlined_call_operand.hbm [shape: f32[256,128], index: 2, kind: output, shape index: {}]
  %s3 = sld [smem:[#allocation0]]
  $region41: #{tpu_custom_call.1} parent=0
    _
  %s5 = ssub.s32 1, %s3
  %s6 = scalar_select 0, %s5, %s3
  $region1: #{tpu_custom_call.1} parent=0
    #allocation2 [shape = 'u8[131072]{0}', space=vmem, size = 0x20000, scoped, tag = 'output window, operand 0']
    #allocation3 [shape = 's32[2]{0}', space=sflag, size = 0x8, scoped, tag = 'scoped memory for tpu_custom_call.1']
    %7 = vsyncpa [#allocation3], 0
    %s8 = scalar_lea.sflag [#allocation3], 1
    %9 = vsyncpa %s8, 0
    loop: start=0, step=1, limit=4
    $region2: #{tpu_custom_call.1} parent=1 // loop_pre_header
      _
    $region3: #{tpu_custom_call.1} parent=1 // loop_header
      %s11 = sphi 0, %s15
      %p12 = scmp.ge.s32.totalorder %s11, 4
      %s21 = sphi 0, %s23
      %s24 = sphi 0, %s21
      %s25 = sphi 0, %s24
      %s41 = sphi 0, %s25
      %s45 = sphi 0, %s45
      %s47 = sphi 0, %s45
      %s48 = sphi 0, %s47
      %s62 = sphi 0, %s48
      %s68 = sphi 0, %s70
      %s71 = sphi 0, %s68
      %s72 = sphi 0, %s71
      %s88 = sphi 0, %s72
    $region4: #{tpu_custom_call.1} parent=1 // loop_header_branch
      %14 = sbr.rel (%p12) target = $region8
    $region5: #{tpu_custom_call.1} parent=1 // loop_body
      %s16 = ssub.s32 %s11, 1
      %s17 = ssub.s32 %s11, 2
      %s18 = sadd.s32 %s11, 1
      %s19 = ssub.s32 %s11, %s18
      %p20 = scmp.eq.s32.totalorder %s19, 0
      %s22 = sadd.s32 %s21, 1
      %s23 = scalar_select %p20, %s21, %s22
      %p26 = pneg %p20
      %p27 = scmp.eq.s32.totalorder %s11, 1
      %p28 = por %p26, %p27
      %p29 = scmp.ne.s32.totalorder %s21, %s24
      %p30 = scmp.eq.s32.totalorder %s11, 0
      %p31 = por %p29, %p30
      %p32 = scmp.ne.s32.totalorder %s21, %s24
      %p33 = scmp.eq.s32.totalorder %s16, 1
      %p34 = por %p32, %p33
      %p35 = scmp.ne.s32.totalorder %s24, %s25
      %p36 = scmp.eq.s32.totalorder %s16, 0
      %p37 = por %p35, %p36
      %p38 = scmp.ne.s32.totalorder %s24, %s25
      %p39 = scmp.eq.s32.totalorder %s17, 1
      %p40 = por %p38, %p39
      %p42 = scmp.ne.s32.totalorder %s25, %s41
      %p43 = scmp.eq.s32.totalorder %s17, 0
      %p44 = por %p42, %p43
      %s46 = sadd.s32 %s45, 1
      %p49 = scmp.eq.s32.totalorder %s11, 1
      %p50 = scmp.ne.s32.totalorder %s45, %s47
      %p51 = scmp.eq.s32.totalorder %s11, 0
      %p52 = por %p50, %p51
      %p53 = scmp.ne.s32.totalorder %s45, %s47
      %p54 = scmp.eq.s32.totalorder %s16, 1
      %p55 = por %p53, %p54
      %p56 = scmp.ne.s32.totalorder %s47, %s48
      %p57 = scmp.eq.s32.totalorder %s16, 0
      %p58 = por %p56, %p57
      %p59 = scmp.ne.s32.totalorder %s47, %s48
      %p60 = scmp.eq.s32.totalorder %s17, 1
      %p61 = por %p59, %p60
      %p63 = scmp.ne.s32.totalorder %s48, %s62
      %p64 = scmp.eq.s32.totalorder %s17, 0
      %p65 = por %p63, %p64
      %s66 = ssub.s32 %s11, %s18
      %p67 = scmp.eq.s32.totalorder %s66, 0
      %s69 = sadd.s32 %s68, 1
      %s70 = scalar_select %p67, %s68, %s69
      %p73 = pneg %p67
      %p74 = scmp.eq.s32.totalorder %s11, 1
      %p75 = por %p73, %p74
      %p76 = scmp.ne.s32.totalorder %s68, %s71
      %p77 = scmp.eq.s32.totalorder %s11, 0
      %p78 = por %p76, %p77
      %p79 = scmp.ne.s32.totalorder %s68, %s71
      %p80 = scmp.eq.s32.totalorder %s16, 1
      %p81 = por %p79, %p80
      %p82 = scmp.ne.s32.totalorder %s71, %s72
      %p83 = scmp.eq.s32.totalorder %s16, 0
      %p84 = por %p82, %p83
      %p85 = scmp.ne.s32.totalorder %s71, %s72
      %p86 = scmp.eq.s32.totalorder %s17, 1
      %p87 = por %p85, %p86
      %p89 = scmp.ne.s32.totalorder %s72, %s88
      %p90 = scmp.eq.s32.totalorder %s17, 0
      %p91 = por %p89, %p90
      %p92 = scmp.le.s32.totalorder 1, %s11
      %p93 = scmp.lt.s32.totalorder %s11, 3
      %p94 = pnand %p92, %p93
      %p95 = pneg %p94
      // Predicated region
      $region9: #{tpu_custom_call.1} parent=5 // pred_check
        _
      $region10: #{tpu_custom_call.1} parent=5 // pred_check_branch
        %97 = sbr.rel (%p94) target = $region12
      $region11: #{tpu_custom_call.1} parent=5 // pred_region
        %s98 = ssub.s32 %s11, 1
        // Predicated region
        $region13: #{tpu_custom_call.1} parent=11 // pred_check
          %p99 = pneg %p58
        $region14: #{tpu_custom_call.1} parent=11 // pred_check_branch
          %101 = sbr.rel (%p99) target = $region16
        $region15: #{tpu_custom_call.1} parent=11 // pred_region
          _
        $region16: #{tpu_custom_call.1} parent=11 // pred_fallthru
          _
      $region12: #{tpu_custom_call.1} parent=5 // pred_fallthru
        _
      %p102 = scmp.lt.s32.totalorder %s11, 2
      // Predicated region
      $region17: #{tpu_custom_call.1} parent=5 // pred_check
        %p103 = pneg %p102
      $region18: #{tpu_custom_call.1} parent=5 // pred_check_branch
        %105 = sbr.rel (%p103) target = $region20
      $region19: #{tpu_custom_call.1} parent=5 // pred_region
        // Predicated region
        $region21: #{tpu_custom_call.1} parent=19 // pred_check
          %p106 = pneg %p31
        $region22: #{tpu_custom_call.1} parent=19 // pred_check_branch
          %108 = sbr.rel (%p106) target = $region24
        $region23: #{tpu_custom_call.1} parent=19 // pred_region
          %s109 = smul.u32 16, %s11
          %p110 = scmp.lt.s32.totalorder %s109, 31
          %s111 = scalar_select %p110, %s109, 31
          %s112 = smul.addr %s111, 4
          %s113 = scalar_lea.vmem %s0, %s112
          %s114 = smul.u32 16, %s11
        $region24: #{tpu_custom_call.1} parent=19 // pred_fallthru
          _
      $region20: #{tpu_custom_call.1} parent=5 // pred_fallthru
        _
      %p115 = scmp.le.s32.totalorder 1, %s11
      %p116 = scmp.lt.s32.totalorder %s11, 3
      %p117 = pnand %p115, %p116
      %p118 = pneg %p117
      // Predicated region
      $region25: #{tpu_custom_call.1} parent=5 // pred_check
        _
      $region26: #{tpu_custom_call.1} parent=5 // pred_check_branch
        %120 = sbr.rel (%p117) target = $region28
      $region27: #{tpu_custom_call.1} parent=5 // pred_region
        %s121 = ssub.s32 %s11, 1
        %s122 = smul.u32 16, %s16
        %p123 = scmp.lt.s32.totalorder %s122, 31
        %s124 = scalar_select %p123, %s122, 31
        %s125 = smul.addr %s124, 4
        %s126 = scalar_lea.vmem %s0, %s125
        %p127 = pneg %p37
        %p128 = pneg %p34
        %p129 = pneg %p58
        %p130 = pneg %p55
        %p131 = pneg %p84
        %p132 = pneg %p81
        %s133 = sand.u32 %s71, 1
        %s134 = scalar_lea.sflag [#allocation3], %s133
        %s135 = sand.u32 %s71, 1
        %s136 = smul.addr %s135, 128
        %s137 = scalar_lea.vmem [#allocation2], %s136
        %s138 = smul.u32 16, %s16
        %p139 = scmp.lt.s32.totalorder %s138, 31
        %s140 = scalar_select %p139, %s138, 31
        %s141 = smul.addr %s140, 4
        %s142 = scalar_lea.vmem %s0, %s141
        %s143 = smul.u32 16, %s16
        %s144 = smul.u32 16, %s16
        %v146 = vld [vmem:[%s142] sm:$0xf]
        %v147 = vld [vmem:[%s142 + $0x4] sm:$0xf]
        %v148 = vld [vmem:[%s142 + $0x8] sm:$0xf]
        %v149 = vld [vmem:[%s142 + $0xc] sm:$0xf]
        %v150 = vld [vmem:[%s142 + $0x10] sm:$0xf]
        %v151 = vld [vmem:[%s142 + $0x14] sm:$0xf]
        %v152 = vld [vmem:[%s142 + $0x18] sm:$0xf]
        %v153 = vld [vmem:[%s142 + $0x1c] sm:$0xf]
        %v154 = vld [vmem:[%s142 + $0x20] sm:$0xf]
        %v155 = vld [vmem:[%s142 + $0x24] sm:$0xf]
        %v156 = vld [vmem:[%s142 + $0x28] sm:$0xf]
        %v157 = vld [vmem:[%s142 + $0x2c] sm:$0xf]
        %v158 = vld [vmem:[%s142 + $0x30] sm:$0xf]
        %v159 = vld [vmem:[%s142 + $0x34] sm:$0xf]
        %v160 = vld [vmem:[%s142 + $0x38] sm:$0xf]
        %v161 = vld [vmem:[%s142 + $0x3c] sm:$0xf]
        %v162 = vld [vmem:[%s1] sm:$0xf]
        %v163 = vld [vmem:[%s1 + $0x4] sm:$0xf]
        %v164 = vld [vmem:[%s1 + $0x8] sm:$0xf]
        %v165 = vld [vmem:[%s1 + $0xc] sm:$0xf]
        %v166 = vld [vmem:[%s1 + $0x10] sm:$0xf]
        %v167 = vld [vmem:[%s1 + $0x14] sm:$0xf]
        %v168 = vld [vmem:[%s1 + $0x18] sm:$0xf]
        %v169 = vld [vmem:[%s1 + $0x1c] sm:$0xf]
        %v186 = vunpack.c.l.b16 %v146
        %v187 = vunpack.c.l.b16 %v147
        %v188 = vunpack.c.l.b16 %v148
        %v189 = vunpack.c.l.b16 %v149
        %v190 = vunpack.c.l.b16 %v150
        %v191 = vunpack.c.l.b16 %v151
        %v192 = vunpack.c.l.b16 %v152
        %v193 = vunpack.c.l.b16 %v153
        %v194 = vunpack.c.l.b16 %v154
        %v195 = vunpack.c.l.b16 %v155
        %v196 = vunpack.c.l.b16 %v156
        %v197 = vunpack.c.l.b16 %v157
        %v198 = vunpack.c.l.b16 %v158
        %v199 = vunpack.c.l.b16 %v159
        %v200 = vunpack.c.l.b16 %v160
        %v201 = vunpack.c.l.b16 %v161
        %v202 = vpack.c.b16 %v187, %v186
        %v203 = vpack.c.b16 %v189, %v188
        %v204 = vpack.c.b16 %v191, %v190
        %v205 = vpack.c.b16 %v193, %v192
        %v206 = vpack.c.b16 %v195, %v194
        %v207 = vpack.c.b16 %v197, %v196
        %v208 = vpack.c.b16 %v199, %v198
        %v209 = vpack.c.b16 %v201, %v200
        %v218 = vunpack.c.l.b16 %v162
        %v219 = vunpack.c.l.b16 %v163
        %v220 = vunpack.c.l.b16 %v164
        %v221 = vunpack.c.l.b16 %v165
        %v222 = vunpack.c.l.b16 %v166
        %v223 = vunpack.c.l.b16 %v167
        %v224 = vunpack.c.l.b16 %v168
        %v225 = vunpack.c.l.b16 %v169
        %v226 = vpack.c.b16 %v219, %v218
        %v227 = vpack.c.b16 %v221, %v220
        %v228 = vpack.c.b16 %v223, %v222
        %v229 = vpack.c.b16 %v225, %v224
        %vm234 = vcmask 523264
        %v236 = vsel %vm234, %v202, 0
        %v239 = vsel %vm234, %v203, 0
        %v242 = vsel %vm234, %v204, 0
        %v245 = vsel %vm234, %v205, 0
        %v248 = vsel %vm234, %v206, 0
        %v251 = vsel %vm234, %v207, 0
        %v254 = vsel %vm234, %v208, 0
        %v257 = vsel %vm234, %v209, 0
        %259 = vmatprep.subr.bf16.mxu0 0
        %260 = vmatpush1.bf16.msra.mxu0 %v226
        %261 = vmatprep.subr.bf16.mxu0 0
        %262 = vmatpush1.bf16.msra.mxu0 %v227
        %263 = vmatprep.subr.bf16.mxu0 0
        %264 = vmatpush1.bf16.msra.mxu0 %v228
        %265 = vmatprep.subr.bf16.mxu0 0
        %266 = vmatpush1.bf16.msra.mxu0 %v229
        %267 = vmatprep.subr.bf16.mxu0 0
        %268 = vmatpush1.bf16.msra.mxu0 0
        %269 = vmatprep.subr.bf16.mxu0 0
        %270 = vmatpush1.bf16.msra.mxu0 0
        %271 = vmatprep.subr.bf16.mxu0 0
        %272 = vmatpush1.bf16.msra.mxu0 0
        %273 = vmatprep.subr.bf16.mxu0 0
        %274 = vmatpush1.bf16.msra.mxu0 0
        %275 = vmatprep.subr.bf16.mxu0 0
        %276 = vmatpush1.bf16.msra.mxu0 0
        %277 = vmatprep.subr.bf16.mxu0 0
        %278 = vmatpush1.bf16.msra.mxu0 0
        %279 = vmatprep.subr.bf16.mxu0 0
        %280 = vmatpush1.bf16.msra.mxu0 0
        %281 = vmatprep.subr.bf16.mxu0 0
        %282 = vmatpush1.bf16.msra.mxu0 0
        %283 = vmatprep.subr.bf16.mxu0 0
        %284 = vmatpush1.bf16.msra.mxu0 0
        %285 = vmatprep.subr.bf16.mxu0 0
        %286 = vmatpush1.bf16.msra.mxu0 0
        %287 = vmatprep.subr.bf16.mxu0 0
        %288 = vmatpush1.bf16.msra.mxu0 0
        %289 = vmatprep.subr.bf16.mxu0 0
        %290 = vmatpush1.bf16.msra.mxu0 0
        %291 = vmatprep.mubr.bf16.mxu0 0
        %292 = vmatmul.mubr.bf16.gmra.mrb[0].mxu0 %v236
        %v293 = vpop.f32.mrb[0].mxu0
        %v294 = vadd.f32 0.0, %v293
        %v295 = vpop.f32.mrb[0].mxu0
        %v296 = vpop.f32.mrb[0].mxu0
        %v297 = vadd.f32 0.0, %v296
        %v298 = vpop.f32.mrb[0].mxu0
        %299 = vmatprep.mubr.bf16.mxu0 0
        %300 = vmatmul.mubr.bf16.gmra.mrb[0].mxu0 %v239
        %v301 = vpop.f32.mrb[0].mxu0
        %v302 = vadd.f32 0.0, %v301
        %v303 = vpop.f32.mrb[0].mxu0
        %v304 = vpop.f32.mrb[0].mxu0
        %v305 = vadd.f32 0.0, %v304
        %v306 = vpop.f32.mrb[0].mxu0
        %307 = vmatprep.mubr.bf16.mxu0 0
        %308 = vmatmul.mubr.bf16.gmra.mrb[0].mxu0 %v242
        %v309 = vpop.f32.mrb[0].mxu0
        %v310 = vadd.f32 0.0, %v309
        %v311 = vpop.f32.mrb[0].mxu0
        %v312 = vpop.f32.mrb[0].mxu0
        %v313 = vadd.f32 0.0, %v312
        %v314 = vpop.f32.mrb[0].mxu0
        %315 = vmatprep.mubr.bf16.mxu0 0
        %316 = vmatmul.mubr.bf16.gmra.mrb[0].mxu0 %v245
        %v317 = vpop.f32.mrb[0].mxu0
        %v318 = vadd.f32 0.0, %v317
        %v319 = vpop.f32.mrb[0].mxu0
        %v320 = vpop.f32.mrb[0].mxu0
        %v321 = vadd.f32 0.0, %v320
        %v322 = vpop.f32.mrb[0].mxu0
        %323 = vmatprep.mubr.bf16.mxu0 0
        %324 = vmatmul.mubr.bf16.gmra.mrb[0].mxu0 %v248
        %v325 = vpop.f32.mrb[0].mxu0
        %v326 = vadd.f32 0.0, %v325
        %v327 = vpop.f32.mrb[0].mxu0
        %v328 = vpop.f32.mrb[0].mxu0
        %v329 = vadd.f32 0.0, %v328
        %v330 = vpop.f32.mrb[0].mxu0
        %331 = vmatprep.mubr.bf16.mxu0 0
        %332 = vmatmul.mubr.bf16.gmra.mrb[0].mxu0 %v251
        %v333 = vpop.f32.mrb[0].mxu0
        %v334 = vadd.f32 0.0, %v333
        %v335 = vpop.f32.mrb[0].mxu0
        %v336 = vpop.f32.mrb[0].mxu0
        %v337 = vadd.f32 0.0, %v336
        %v338 = vpop.f32.mrb[0].mxu0
        %339 = vmatprep.mubr.bf16.mxu0 0
        %340 = vmatmul.mubr.bf16.gmra.mrb[0].mxu0 %v254
        %v341 = vpop.f32.mrb[0].mxu0
        %v342 = vadd.f32 0.0, %v341
        %v343 = vpop.f32.mrb[0].mxu0
        %v344 = vpop.f32.mrb[0].mxu0
        %v345 = vadd.f32 0.0, %v344
        %v346 = vpop.f32.mrb[0].mxu0
        %347 = vmatprep.mubr.bf16.mxu0 0
        %348 = vmatmul.mubr.bf16.gmra.mrb[0].mxu0 %v257
        %v349 = vpop.f32.mrb[0].mxu0
        %v350 = vadd.f32 0.0, %v349
        %v351 = vpop.f32.mrb[0].mxu0
        %v352 = vpop.f32.mrb[0].mxu0
        %v353 = vadd.f32 0.0, %v352
        %v354 = vpop.f32.mrb[0].mxu0
        %355 = vdwg.mxu0
        %356 = vst [vmem:[%s137] sm:$0xff] %v294
        %357 = vst [vmem:[%s137 + $0x8] sm:$0xff] %v297
        %358 = vst [vmem:[%s137 + $0x10] sm:$0xff] %v302
        %359 = vst [vmem:[%s137 + $0x18] sm:$0xff] %v305
        %360 = vst [vmem:[%s137 + $0x20] sm:$0xff] %v310
        %361 = vst [vmem:[%s137 + $0x28] sm:$0xff] %v313
        %362 = vst [vmem:[%s137 + $0x30] sm:$0xff] %v318
        %363 = vst [vmem:[%s137 + $0x38] sm:$0xff] %v321
        %364 = vst [vmem:[%s137 + $0x40] sm:$0xff] %v326
        %365 = vst [vmem:[%s137 + $0x48] sm:$0xff] %v329
        %366 = vst [vmem:[%s137 + $0x50] sm:$0xff] %v334
        %367 = vst [vmem:[%s137 + $0x58] sm:$0xff] %v337
        %368 = vst [vmem:[%s137 + $0x60] sm:$0xff] %v342
        %369 = vst [vmem:[%s137 + $0x68] sm:$0xff] %v345
        %370 = vst [vmem:[%s137 + $0x70] sm:$0xff] %v350
        %371 = vst [vmem:[%s137 + $0x78] sm:$0xff] %v353
        %s372 = sand.u32 %s71, 1
        %s373 = scalar_lea.sflag [#allocation3], %s372
        %s374 = sand.u32 %s71, 1
        %s375 = smul.addr %s374, 128
        %s376 = scalar_lea.vmem [#allocation2], %s375
        // Predicated region
        $region29: #{tpu_custom_call.1} parent=27 // pred_check
          %p377 = pneg %p81
        $region30: #{tpu_custom_call.1} parent=27 // pred_check_branch
          %379 = sbr.rel (%p377) target = $region32
        $region31: #{tpu_custom_call.1} parent=27 // pred_region
          %s380 = smul.u32 16, %s16
          %s382 = ssub.s32 2048, 2048
          %383 = vsyncadd %s373, %s382
          %s384 = smul.addr %s380, 128
          %s385 = scalar_lea.hbm %s2, %s384
          %s386 = sshll.u32 %s376, 4
          %s387 = int_to_ptr.vmem [resolvable:$true] %s386
          %392 = dma.vmem_to_hbm [thread:$0]  %s387, 2048, %s385, %s373, 128, 128, 8
        $region32: #{tpu_custom_call.1} parent=27 // pred_fallthru
          _
      $region28: #{tpu_custom_call.1} parent=5 // pred_fallthru
        _
      %p393 = scmp.le.s32.totalorder 2, %s11
      // Predicated region
      $region33: #{tpu_custom_call.1} parent=5 // pred_check
        %p394 = pneg %p393
      $region34: #{tpu_custom_call.1} parent=5 // pred_check_branch
        %396 = sbr.rel (%p394) target = $region36
      $region35: #{tpu_custom_call.1} parent=5 // pred_region
        %s397 = ssub.s32 %s11, 2
        // Predicated region
        $region37: #{tpu_custom_call.1} parent=35 // pred_check
          %p398 = pneg %p87
        $region38: #{tpu_custom_call.1} parent=35 // pred_check_branch
          %400 = sbr.rel (%p398) target = $region40
        $region39: #{tpu_custom_call.1} parent=35 // pred_region
          %s401 = sand.u32 %s72, 1
          %s402 = scalar_lea.sflag [#allocation3], %s401
          %s403 = sand.u32 %s72, 1
          %s404 = smul.addr %s403, 128
          %s405 = scalar_lea.vmem [#allocation2], %s404
          %406 = dma.done %s402, 2048
        $region40: #{tpu_custom_call.1} parent=35 // pred_fallthru
          _
      $region36: #{tpu_custom_call.1} parent=5 // pred_fallthru
        _
    $region6: #{tpu_custom_call.1} parent=1 // loop_footer
      %s15 = sadd.s32 1, %s11
    $region7: #{tpu_custom_call.1} parent=1 // loop_footer_branch
      %10 = sbr.rel target = $region3
    $region8: #{tpu_custom_call.1} parent=1 // loop_exit
      _
    %407 = vsyncpa [#allocation3], 1
    %s408 = scalar_lea.sflag [#allocation3], 1
    %409 = vsyncpa %s408, 1

</llo_original>
